<compile_context>
chip_gen: v7x
topology: tpu7x:2x2x1
jax: 0.10.0
libtpu: 0.0.40
codegen_flags: <defaults>
</compile_context>

<pallas_src>
import math

import jax
import jax.numpy as jnp
from jax.experimental import pallas as pl
from jax.experimental.pallas import tpu as pltpu


_INV_1P1 = 1.0 / 1.1          # precomputed: multiply instead of divide
_MIB = 1024 * 1024


# ----------------------------- Pallas kernels ------------------------------


def _group_swish_kernel(x_ref, scale_ref, o_ref):
    # x_ref:     (tile_r, tile_c)  activation tile
    # scale_ref: (tile_r, 1)       softplus(beta) per row, precomputed in f32
    x = x_ref[...].astype(jnp.float32)
    s = scale_ref[...].astype(jnp.float32)          # broadcast over lanes (VPU)
    y = x * jax.nn.sigmoid(x * s) * _INV_1P1        # sigmoid -> EUP, muls -> VALU
    o_ref[...] = y.astype(o_ref.dtype)


_NL_FNS = {
    "relu": lambda x: jnp.maximum(x, 0.0),
    "sigmoid": jax.nn.sigmoid,
    "tanh": jnp.tanh,
    "selu": jax.nn.selu,
    "softplus": jax.nn.softplus,
    "elu": jax.nn.elu,
}
# rough transcendental count per element, for the cost estimate
_NL_TRANSC = {"relu": 0, "sigmoid": 1, "tanh": 1, "selu": 1, "softplus": 2, "elu": 1}


def _make_elementwise_kernel(fn):
    def kernel(x_ref, o_ref):
        x = x_ref[...].astype(jnp.float32)   # keep transcendentals in f32 (v5e)
        o_ref[...] = fn(x).astype(o_ref.dtype)

    return kernel


# ------------------------------ tiling helpers ------------------------------


def _round_up(n, m):
    return -(-n // m) * m


def _sublane_multiple(dtype):
    # sub-32-bit dtypes pack along sublanes: 8 for f32, 16 for bf16, 32 for int8
    return max(8, 32 // jnp.dtype(dtype).itemsize)


def _target_tile_bytes():
    """Generation-aware per-tile byte budget.

    ~1 MiB tiles already reach ~85% of HBM roofline, so small tiles cost ~1%
    and keep every generation (v5e 16 MiB scoped default, v7x 64 MiB physical
    VMEM) comfortably inside budget."""
    try:
        info = pltpu.get_tpu_info()
        vmem = int(getattr(info, "vmem_capacity_bytes", 0))
        if vmem >= 96 * _MIB:        # v5e / v6e: 128 MiB physical VMEM
            return 2 * _MIB
    except Exception:
        pass
    return 1 * _MIB                  # v7x (64 MiB per TC) or unknown chip


def _largest_divisor(n, mult, cap):
    """Largest d with d % mult == 0, n % d == 0, d <= cap.  Requires n % mult == 0."""
    cap = max(mult, (min(n, cap) // mult) * mult)
    d = cap
    while d > mult:
        if n % d == 0:
            return d
        d -= mult
    return mult


def _pick_tiles(rows, cols, itemsize, target_bytes, sub_mult):
    """Pick (tile_r, tile_c) dividing (rows, cols).  Preconditions (guaranteed by
    the wrapper padding): rows % sub_mult == 0 and cols % 128 == 0."""
    cap_c = max(128, target_bytes // max(1, sub_mult * itemsize))
    tile_c = _largest_divisor(cols, 128, cap_c)
    cap_r = max(sub_mult, target_bytes // max(1, tile_c * itemsize))
    tile_r = _largest_divisor(rows, sub_mult, cap_r)

    # Guarantee >= 2 grid blocks when the data allows it, so "parallel"
    # dimension semantics can shard across v7x's 2 TensorCores.
    if (rows // tile_r) * (cols // tile_c) < 2:
        if rows // sub_mult >= 2:
            tile_r = _largest_divisor(rows, sub_mult, rows // 2)
        elif cols // 128 >= 2:
            tile_c = _largest_divisor(cols, 128, cols // 2)
    return tile_r, tile_c


def _vmem_limit_bytes(tile_r, tile_c, in_itemsize, out_itemsize, extra_in_bytes=0):
    """Explicit scoped-VMEM request sized from the actual tiles (not the default)."""
    tile = tile_r * tile_c
    buffered = 3 * tile * (in_itemsize + out_itemsize) + 2 * extra_in_bytes
    intermediates = 4 * tile * 4        # f32 compute slabs inside the body
    required = buffered + intermediates + 4 * _MIB
    return int(min(max(required, 16 * _MIB), 48 * _MIB))


def _data_spec(block_shape, index_map, deep):
    if deep:
        # 3-deep pipelining hides per-grid-step overhead / DMA issue latency on
        # fast-HBM chips (v7x); cheap now that tiles are ~1-2 MiB.
        try:
            return pl.BlockSpec(block_shape, index_map, pipeline_mode=pl.Buffered(3))
        except Exception:
            pass
    return pl.BlockSpec(block_shape, index_map)


def _lane_dense_view(x, sub_mult):
    """Pointwise ops are order-free: flatten, pad, and refactor into the most
    lane-dense 2-D slab (cols a multiple of 128, rows a multiple of sub_mult)."""
    total = int(math.prod(int(d) for d in x.shape)) if x.ndim else 1
    flat = x.reshape(total)
    quantum = sub_mult * 128
    pad_total = _round_up(total, quantum)
    if pad_total != total:
        flat = jnp.pad(flat, (0, pad_total - total))
    cols = 128
    for c in (2048, 1024, 512, 256, 128):
        if pad_total % c == 0 and (pad_total // c) % sub_mult == 0:
            cols = c
            break
    rows = pad_total // cols
    return flat.reshape(rows, cols), total


# ------------------------------ pallas drivers ------------------------------


def _run_group_swish(x2, scale_rows, out_dtype, sub_mult):
    rows, cols = x2.shape
    in_isz = jnp.dtype(x2.dtype).itemsize
    out_isz = jnp.dtype(out_dtype).itemsize
    tile_r, tile_c = _pick_tiles(rows, cols, max(in_isz, out_isz),
                                 _target_tile_bytes(), sub_mult)
    grid = (rows // tile_r, cols // tile_c)
    n = rows * cols
    cost = pl.CostEstimate(
        flops=3 * n,
        transcendentals=n,
        bytes_accessed=n * (in_isz + out_isz) + rows * 4,
    )
    vmem_limit = _vmem_limit_bytes(tile_r, tile_c, in_isz, out_isz,
                                   extra_in_bytes=tile_r * 128 * 4)

    def call(deep):
        return pl.pallas_call(
            _group_swish_kernel,
            out_shape=jax.ShapeDtypeStruct((rows, cols), out_dtype),
            grid=grid,
            in_specs=[
                _data_spec((tile_r, tile_c), lambda i, j: (i, j), deep),
                # tiny per-row scale; re-DMAed only when the row block changes
                pl.BlockSpec((tile_r, 1), lambda i, j: (i, 0)),
            ],
            out_specs=_data_spec((tile_r, tile_c), lambda i, j: (i, j), deep),
            compiler_params=pltpu.CompilerParams(
                dimension_semantics=("parallel", "parallel"),
                vmem_limit_bytes=vmem_limit,
            ),
            cost_estimate=cost,
        )(x2, scale_rows)

    try:
        return call(True)
    except Exception:
        return call(False)   # fallback: default double buffering


def _run_elementwise(fn, transc_per_elem, x2, out_dtype, sub_mult):
    rows, cols = x2.shape
    in_isz = jnp.dtype(x2.dtype).itemsize
    out_isz = jnp.dtype(out_dtype).itemsize
    tile_r, tile_c = _pick_tiles(rows, cols, max(in_isz, out_isz),
                                 _target_tile_bytes(), sub_mult)
    grid = (rows // tile_r, cols // tile_c)
    n = rows * cols
    cost = pl.CostEstimate(
        flops=2 * n,
        transcendentals=transc_per_elem * n,
        bytes_accessed=n * (in_isz + out_isz),
    )
    vmem_limit = _vmem_limit_bytes(tile_r, tile_c, in_isz, out_isz)

    def call(deep):
        return pl.pallas_call(
            _make_elementwise_kernel(fn),
            out_shape=jax.ShapeDtypeStruct((rows, cols), out_dtype),
            grid=grid,
            in_specs=[_data_spec((tile_r, tile_c), lambda i, j: (i, j), deep)],
            out_specs=_data_spec((tile_r, tile_c), lambda i, j: (i, j), deep),
            compiler_params=pltpu.CompilerParams(
                dimension_semantics=("parallel", "parallel"),
                vmem_limit_bytes=vmem_limit,
            ),
            cost_estimate=cost,
        )(x2)

    try:
        return call(True)
    except Exception:
        return call(False)


# ------------------------------ Python wrapper ------------------------------


def group_activation(x, nl="swish", groups=1, beta=None):
    """Forward pass of GroupActivation.  x: (B, C, *spatial)."""
    orig_shape = x.shape
    B, C = x.shape[0], x.shape[1]
    sp = int(math.prod(int(d) for d in x.shape[2:])) if x.ndim > 2 else 1
    sub_mult = _sublane_multiple(x.dtype)

    if nl == "swish":
        if C % groups != 0:
            raise ValueError(f"channels ({C}) must be divisible by groups ({groups})")
        n_ch_group = C // groups
        if beta is None:
            # nn.Parameter(torch.tensor([0.5 for _ in range(groups)]))
            beta = jnp.full((groups,), 0.5, dtype=jnp.float32)
        # Hoist softplus(beta) out of the kernel: `groups` scalars, in f32.
        scale = jax.nn.softplus(beta.astype(jnp.float32))            # (groups,)

        rows = B * groups                     # one row per (batch, group)
        cols = n_ch_group * sp                # scale is constant along a row
        pad_rows = _round_up(rows, sub_mult)
        pad_cols = _round_up(cols, 128)

        x2 = x.reshape(rows, cols)
        scale_rows = jnp.tile(scale, (B,)).reshape(rows, 1)          # row b*groups+g
        if (pad_rows, pad_cols) != (rows, cols):
            # lane/sublane padding keeps every load/store a full, unmasked vreg op
            x2 = jnp.pad(x2, ((0, pad_rows - rows), (0, pad_cols - cols)))
            scale_rows = jnp.pad(scale_rows, ((0, pad_rows - rows), (0, 0)))

        out2 = _run_group_swish(x2, scale_rows, x.dtype, sub_mult)
        return out2[:rows, :cols].reshape(orig_shape)

    fn = _NL_FNS[nl]
    x2, total = _lane_dense_view(x, sub_mult)
    out2 = _run_elementwise(fn, _NL_TRANSC[nl], x2, x.dtype, sub_mult)
    return out2.reshape(-1)[:total].reshape(orig_shape)


# ------------------------------- reference ---------------------------------


def _ref_group_swish(x, beta, groups):
    B, C = x.shape[:2]
    t = x.shape[2:]
    n = C // groups
    xr = x.reshape(B, groups, n, *t)
    b = beta.reshape(1, groups, 1, *([1] * len(t)))
    y = (xr * jax.nn.sigmoid(xr * jax.nn.softplus(b))) / 1.1
    return y.reshape(B, C, *t)


# --------------------------------- main -------------------------------------

if __name__ == "__main__":
    key = jax.random.PRNGKey(0)
    B, C, H, W = 2, 4, 16, 16
    groups = 2
    x = jax.random.normal(key, (B, C, H, W), dtype=jnp.float32)

    # GroupActivation('swish', groups=2)
    beta = jnp.full((groups,), 0.5, dtype=jnp.float32)
    out_swish = group_activation(x, nl="swish", groups=groups, beta=beta)
    out_swish = jax.block_until_ready(out_swish)
    ref_swish = _ref_group_swish(x, beta, groups)
    assert out_swish.shape == x.shape and out_swish.dtype == x.dtype
    assert jnp.allclose(out_swish, ref_swish, rtol=1e-5, atol=1e-5)

    # GroupActivation('relu')
    out_relu = jax.block_until_ready(group_activation(x, nl="relu"))
    assert jnp.allclose(out_relu, jnp.maximum(x, 0.0), rtol=1e-6, atol=1e-6)

    # GroupActivation('tanh')
    out_tanh = jax.block_until_ready(group_activation(x, nl="tanh"))
    assert jnp.allclose(out_tanh, jnp.tanh(x), rtol=1e-5, atol=1e-6)

    print("KERNEL_OK")
</pallas_src>

<mosaic_0001>
module attributes {stable_mosaic.version = 11 : i64} {
  func.func @_group_swish_kernel(%arg0: i32, %arg1: i32, %arg2: memref<8x256xf32, #tpu.memory_space<vmem>>, %arg3: memref<8x1xf32, #tpu.memory_space<vmem>>, %arg4: memref<8x256xf32, #tpu.memory_space<vmem>>) attributes {dimension_semantics = [#tpu.dimension_semantics<parallel>, #tpu.dimension_semantics<parallel>], iteration_bounds = array<i64: 1, 2>, scalar_prefetch = 0 : i64, scratch_operands = 0 : i64, tpu.core_type = #tpu.core_type<tc>, window_params = [{transform_indices = @transform_0, window_bounds = array<i64: 8, 256>}, {transform_indices = @transform_1, window_bounds = array<i64: 8, 1>}, {transform_indices = @transform_2, window_bounds = array<i64: 8, 256>}]} {
    %c0 = arith.constant 0 : index
    %c0_0 = arith.constant 0 : index
    %0 = vector.load %arg2[%c0, %c0_0] : memref<8x256xf32, #tpu.memory_space<vmem>>, vector<8x256xf32>
    %c0_1 = arith.constant 0 : index
    %c0_2 = arith.constant 0 : index
    %1 = vector.load %arg3[%c0_1, %c0_2] : memref<8x1xf32, #tpu.memory_space<vmem>>, vector<8x1xf32>
    %2 = vector.broadcast %1 : vector<8x1xf32> to vector<8x256xf32>
    %3 = arith.mulf %0, %2 : vector<8x256xf32>
    %4 = arith.negf %3 : vector<8x256xf32>
    %5 = math.exp %4 : vector<8x256xf32>
    %cst = arith.constant 1.000000e+00 : f32
    %6 = vector.broadcast %cst : f32 to vector<8x256xf32>
    %7 = arith.addf %6, %5 : vector<8x256xf32>
    %8 = arith.divf %6, %7 : vector<8x256xf32>
    %9 = arith.mulf %0, %8 : vector<8x256xf32>
    %cst_3 = arith.constant 0.909090936 : f32
    %10 = vector.broadcast %cst_3 : f32 to vector<8x256xf32>
    %11 = arith.mulf %9, %10 : vector<8x256xf32>
    %c0_4 = arith.constant 0 : index
    %c0_5 = arith.constant 0 : index
    %12 = vector.load %arg4[%c0_4, %c0_5] : memref<8x256xf32, #tpu.memory_space<vmem>>, vector<8x256xf32>
    tpu.vector_store %arg4[%c0_4, %c0_5], %11 {strides = array<i32>} : memref<8x256xf32, #tpu.memory_space<vmem>>, vector<8x256xf32>,
    return
  }
  func.func @transform_0(%arg0: i32, %arg1: i32) -> (i32, i32) {
    %c0_i32 = arith.constant 0 : i32
    return %arg0, %arg1 : i32, i32
  }
  func.func @transform_1(%arg0: i32, %arg1: i32) -> (i32, i32) {
    %c0_i32 = arith.constant 0 : i32
    %c0_i32_0 = arith.constant 0 : i32
    return %arg0, %c0_i32 : i32, i32
  }
  func.func @transform_2(%arg0: i32, %arg1: i32) -> (i32, i32) {
    %c0_i32 = arith.constant 0 : i32
    return %arg0, %arg1 : i32, i32
  }
}

</mosaic_0001>

<llo_original>
// kernel: tpu_custom_call.1
$region0: #{tpu_custom_call.1}
  #allocation0 [shape = 'u32[]', space=smem, size = 0x4, offset = 0x4, fixed_abs, tag = 'smem constant byte address 0x4 - core index']
  #allocation1 [shape = 'u32[144,128]{1,0:T(1,128)}', space=vmem, size = 0x12000, scoped, tag = 'internal scratch']
  %s0 = inlined_call_operand.hbm [shape: f32[8,512], index: 0, kind: input, shape index: {}]
  %s1 = inlined_call_operand.vmem [shape: f32[8,1], index: 1, kind: input, shape index: {}]
  %s2 = inlined_call_operand.hbm [shape: f32[8,512], index: 2, kind: output, shape index: {}]
  %s3 = sld [smem:[#allocation0]]
  $region45: #{tpu_custom_call.1} parent=0
    _
  %s5 = ssub.s32 1, %s3
  %s6 = scalar_select 0, %s5, %s3
  $region1: #{tpu_custom_call.1} parent=0
    #allocation2 [shape = 'u8[16384]{0}', space=vmem, size = 0x4000, scoped, tag = 'input window, operand 0']
    #allocation3 [shape = 's32[2]{0}', space=sflag, size = 0x8, scoped, tag = 'scoped memory for tpu_custom_call.1']
    #allocation4 [shape = 's32[2]{0}', space=sflag, size = 0x8, scoped, tag = 'scoped memory for tpu_custom_call.1']
    #allocation5 [shape = 'u8[16384]{0}', space=vmem, size = 0x4000, scoped, tag = 'output window, operand 0']
    %7 = vsyncpa [#allocation3], 0
    %s8 = scalar_lea.sflag [#allocation3], 1
    %9 = vsyncpa %s8, 0
    %10 = vsyncpa [#allocation4], 0
    %s11 = scalar_lea.sflag [#allocation4], 1
    %12 = vsyncpa %s11, 0
    loop: start=0, step=1, limit=4
    $region2: #{tpu_custom_call.1} parent=1 // loop_pre_header
      _
    $region3: #{tpu_custom_call.1} parent=1 // loop_header
      %s14 = sphi 0, %s18
      %p15 = scmp.ge.s32.totalorder %s14, 4
      %s21 = sphi 0, %s33
      %s22 = sphi 0, %s29
      %s23 = sphi 0, %s21
      %s24 = sphi 0, %s22
      %s25 = sphi 0, %s23
      %s26 = sphi 0, %s24
      %s38 = sphi 0, %s40
      %s41 = sphi 0, %s38
      %s42 = sphi 0, %s41
      %s58 = sphi 0, %s42
      %s64 = sphi 0, %s66
      %s67 = sphi 0, %s64
      %s68 = sphi 0, %s67
      %s84 = sphi 0, %s68
      %s92 = sphi 0, %s94
      %s95 = sphi 0, %s92
      %s96 = sphi 0, %s95
      %s112 = sphi 0, %s96
    $region4: #{tpu_custom_call.1} parent=1 // loop_header_branch
      %17 = sbr.rel (%p15) target = $region8
    $region5: #{tpu_custom_call.1} parent=1 // loop_body
      %s19 = ssub.s32 %s14, 1
      %s20 = ssub.s32 %s14, 2
      %s27 = sadd.s32 1, %s22
      %p28 = scmp.ge.s32.totalorder %s27, 2
      %s29 = scalar_select %p28, 0, %s27
      %s30 = sadd.s32 1, %s21
      %s31 = scalar_select %p28, %s30, %s21
      %p32 = scmp.ge.s32.totalorder %s31, 1
      %s33 = scalar_select %p32, 0, %s31
      %s34 = ssub.s32 %s21, %s33
      %s35 = ssub.s32 %s22, %s29
      %s36 = sor.u32 %s34, %s35
      %p37 = scmp.eq.s32.totalorder %s36, 0
      %s39 = sadd.s32 %s38, 1
      %s40 = scalar_select %p37, %s38, %s39
      %p43 = pneg %p37
      %p44 = scmp.eq.s32.totalorder %s14, 1
      %p45 = por %p43, %p44
      %p46 = scmp.ne.s32.totalorder %s38, %s41
      %p47 = scmp.eq.s32.totalorder %s14, 0
      %p48 = por %p46, %p47
      %p49 = scmp.ne.s32.totalorder %s38, %s41
      %p50 = scmp.eq.s32.totalorder %s19, 1
      %p51 = por %p49, %p50
      %p52 = scmp.ne.s32.totalorder %s41, %s42
      %p53 = scmp.eq.s32.totalorder %s19, 0
      %p54 = por %p52, %p53
      %p55 = scmp.ne.s32.totalorder %s41, %s42
      %p56 = scmp.eq.s32.totalorder %s20, 1
      %p57 = por %p55, %p56
      %p59 = scmp.ne.s32.totalorder %s42, %s58
      %p60 = scmp.eq.s32.totalorder %s20, 0
      %p61 = por %p59, %p60
      %s62 = ssub.s32 %s21, %s33
      %p63 = scmp.eq.s32.totalorder %s62, 0
      %s65 = sadd.s32 %s64, 1
      %s66 = scalar_select %p63, %s64, %s65
      %p69 = pneg %p63
      %p70 = scmp.eq.s32.totalorder %s14, 1
      %p71 = por %p69, %p70
      %p72 = scmp.ne.s32.totalorder %s64, %s67
      %p73 = scmp.eq.s32.totalorder %s14, 0
      %p74 = por %p72, %p73
      %p75 = scmp.ne.s32.totalorder %s64, %s67
      %p76 = scmp.eq.s32.totalorder %s19, 1
      %p77 = por %p75, %p76
      %p78 = scmp.ne.s32.totalorder %s67, %s68
      %p79 = scmp.eq.s32.totalorder %s19, 0
      %p80 = por %p78, %p79
      %p81 = scmp.ne.s32.totalorder %s67, %s68
      %p82 = scmp.eq.s32.totalorder %s20, 1
      %p83 = por %p81, %p82
      %p85 = scmp.ne.s32.totalorder %s68, %s84
      %p86 = scmp.eq.s32.totalorder %s20, 0
      %p87 = por %p85, %p86
      %s88 = ssub.s32 %s21, %s33
      %s89 = ssub.s32 %s22, %s29
      %s90 = sor.u32 %s88, %s89
      %p91 = scmp.eq.s32.totalorder %s90, 0
      %s93 = sadd.s32 %s92, 1
      %s94 = scalar_select %p91, %s92, %s93
      %p97 = pneg %p91
      %p98 = scmp.eq.s32.totalorder %s14, 1
      %p99 = por %p97, %p98
      %p100 = scmp.ne.s32.totalorder %s92, %s95
      %p101 = scmp.eq.s32.totalorder %s14, 0
      %p102 = por %p100, %p101
      %p103 = scmp.ne.s32.totalorder %s92, %s95
      %p104 = scmp.eq.s32.totalorder %s19, 1
      %p105 = por %p103, %p104
      %p106 = scmp.ne.s32.totalorder %s95, %s96
      %p107 = scmp.eq.s32.totalorder %s19, 0
      %p108 = por %p106, %p107
      %p109 = scmp.ne.s32.totalorder %s95, %s96
      %p110 = scmp.eq.s32.totalorder %s20, 1
      %p111 = por %p109, %p110
      %p113 = scmp.ne.s32.totalorder %s96, %s112
      %p114 = scmp.eq.s32.totalorder %s20, 0
      %p115 = por %p113, %p114
      %p116 = scmp.le.s32.totalorder 1, %s14
      %p117 = scmp.lt.s32.totalorder %s14, 3
      %p118 = pnand %p116, %p117
      %p119 = pneg %p118
      // Predicated region
      $region9: #{tpu_custom_call.1} parent=5 // pred_check
        _
      $region10: #{tpu_custom_call.1} parent=5 // pred_check_branch
        %121 = sbr.rel (%p118) target = $region12
      $region11: #{tpu_custom_call.1} parent=5 // pred_region
        %s122 = ssub.s32 %s14, 1
        // Predicated region
        $region13: #{tpu_custom_call.1} parent=11 // pred_check
          %p123 = pneg %p80
        $region14: #{tpu_custom_call.1} parent=11 // pred_check_branch
          %125 = sbr.rel (%p123) target = $region16
        $region15: #{tpu_custom_call.1} parent=11 // pred_region
          %p126 = scmp.lt.s32.totalorder %s23, 0
          %s127 = scalar_select %p126, %s23, 0
          %s128 = smul.addr %s127, 8
          %s129 = scalar_lea.vmem %s1, %s128
        $region16: #{tpu_custom_call.1} parent=11 // pred_fallthru
          _
      $region12: #{tpu_custom_call.1} parent=5 // pred_fallthru
        _
      %p130 = scmp.lt.s32.totalorder %s14, 2
      // Predicated region
      $region17: #{tpu_custom_call.1} parent=5 // pred_check
        %p131 = pneg %p130
      $region18: #{tpu_custom_call.1} parent=5 // pred_check_branch
        %133 = sbr.rel (%p131) target = $region20
      $region19: #{tpu_custom_call.1} parent=5 // pred_region
        // Predicated region
        $region21: #{tpu_custom_call.1} parent=19 // pred_check
          %p134 = pneg %p48
        $region22: #{tpu_custom_call.1} parent=19 // pred_check_branch
          %136 = sbr.rel (%p134) target = $region24
        $region23: #{tpu_custom_call.1} parent=19 // pred_region
          %s137 = sand.u32 %s38, 1
          %s138 = scalar_lea.sflag [#allocation3], %s137
          %s139 = sand.u32 %s38, 1
          %s140 = smul.addr %s139, 16
          %s141 = scalar_lea.vmem [#allocation2], %s140
          %s142 = smul.u32 2, %s22
          %s144 = ssub.s32 256, 256
          %145 = vsyncadd %s138, %s144
          %s146 = smul.addr %s21, 4
          %s147 = sadd.s32 %s142, %s146
          %s148 = smul.addr %s147, 128
          %s149 = scalar_lea.hbm %s0, %s148
          %s151 = sshll.u32 %s141, 4
          %s152 = int_to_ptr.vmem [resolvable:$true] %s151
          %154 = dma.hbm_to_vmem [thread:$0]  %s149, 256, %s152, %s138
        $region24: #{tpu_custom_call.1} parent=19 // pred_fallthru
          _
      $region20: #{tpu_custom_call.1} parent=5 // pred_fallthru
        _
      %p155 = scmp.le.s32.totalorder 1, %s14
      %p156 = scmp.lt.s32.totalorder %s14, 3
      %p157 = pnand %p155, %p156
      %p158 = pneg %p157
      // Predicated region
      $region25: #{tpu_custom_call.1} parent=5 // pred_check
        _
      $region26: #{tpu_custom_call.1} parent=5 // pred_check_branch
        %160 = sbr.rel (%p157) target = $region28
      $region27: #{tpu_custom_call.1} parent=5 // pred_region
        %s161 = ssub.s32 %s14, 1
        %s162 = sand.u32 %s41, 1
        %s163 = scalar_lea.sflag [#allocation3], %s162
        %s164 = sand.u32 %s41, 1
        %s165 = smul.addr %s164, 16
        %s166 = scalar_lea.vmem [#allocation2], %s165
        // Predicated region
        $region29: #{tpu_custom_call.1} parent=27 // pred_check
          %p167 = pneg %p54
        $region30: #{tpu_custom_call.1} parent=27 // pred_check_branch
          %169 = sbr.rel (%p167) target = $region32
        $region31: #{tpu_custom_call.1} parent=27 // pred_region
          %170 = dma.done %s163, 256
        $region32: #{tpu_custom_call.1} parent=27 // pred_fallthru
          _
        %s171 = sand.u32 %s41, 1
        %s172 = scalar_lea.sflag [#allocation3], %s171
        %s173 = sand.u32 %s41, 1
        %s174 = smul.addr %s173, 16
        %s175 = scalar_lea.vmem [#allocation2], %s174
        %p176 = pneg %p54
        %p177 = pneg %p51
        %p178 = scmp.lt.s32.totalorder %s23, 0
        %s179 = scalar_select %p178, %s23, 0
        %s180 = smul.addr %s179, 8
        %s181 = scalar_lea.vmem %s1, %s180
        %p182 = pneg %p80
        %p183 = pneg %p77
        %p184 = pneg %p108
        %p185 = pneg %p105
        %s186 = sand.u32 %s95, 1
        %s187 = scalar_lea.sflag [#allocation4], %s186
        %s188 = sand.u32 %s95, 1
        %s189 = smul.addr %s188, 16
        %s190 = scalar_lea.vmem [#allocation5], %s189
        %s191 = smul.u32 2, %s24
        %p192 = scmp.lt.s32.totalorder %s23, 0
        %s193 = scalar_select %p192, %s23, 0
        %s194 = smul.addr %s193, 8
        %s195 = scalar_lea.vmem %s1, %s194
        %s196 = smul.u32 2, %s24
        %v197 = vld [vmem:[%s166] sm:$0xff]
        %v198 = vld [vmem:[%s166 + $0x8] sm:$0xff]
        %v199 = vld [vmem:[%s195] sm:$0xff]
        %201 = vset.pattern.permute.xlu0 0
        %202 = vperm.xlu0 %201, %v199
        %v203 = vpop.permute.xlu0 %202
        %v205 = vmul.f32 %v197, %v203
        %v206 = vmul.f32 %v198, %v203
        %v207 = vxor.u32 %v205, 2147483648
        %v208 = vxor.u32 %v206, 2147483648
        %v209 = vmul.f32 %v207, 1.442695
        %v210 = vpow.pop %v209
        %v211 = vmul.f32 %v208, 1.442695
        %v212 = vpow.pop %v211
        %v213 = vadd.f32 %v210, 1.0
        %v214 = vadd.f32 %v212, 1.0
        %v215 = vrcp.pop %v213
        %v216 = vmul.f32 1.0, %v215
        %v217 = vrcp.pop %v214
        %v218 = vmul.f32 1.0, %v217
        %v219 = vmul.f32 %v197, %v216
        %v220 = vmul.f32 %v198, %v218
        %v221 = vmul.f32 %v219, 0.90909094
        %v222 = vmul.f32 %v220, 0.90909094
        %223 = vst [vmem:[%s190] sm:$0xff] %v221
        %224 = vst [vmem:[%s190 + $0x8] sm:$0xff] %v222
        %s225 = sand.u32 %s95, 1
        %s226 = scalar_lea.sflag [#allocation4], %s225
        %s227 = sand.u32 %s95, 1
        %s228 = smul.addr %s227, 16
        %s229 = scalar_lea.vmem [#allocation5], %s228
        // Predicated region
        $region33: #{tpu_custom_call.1} parent=27 // pred_check
          %p230 = pneg %p105
        $region34: #{tpu_custom_call.1} parent=27 // pred_check_branch
          %232 = sbr.rel (%p230) target = $region36
        $region35: #{tpu_custom_call.1} parent=27 // pred_region
          %s233 = smul.u32 2, %s24
          %s235 = ssub.s32 256, 256
          %236 = vsyncadd %s226, %s235
          %s237 = smul.addr %s23, 4
          %s238 = sadd.s32 %s233, %s237
          %s239 = smul.addr %s238, 128
          %s240 = scalar_lea.hbm %s2, %s239
          %s242 = sshll.u32 %s229, 4
          %s243 = int_to_ptr.vmem [resolvable:$true] %s242
          %245 = dma.vmem_to_hbm [thread:$0]  %s243, 256, %s240, %s226
        $region36: #{tpu_custom_call.1} parent=27 // pred_fallthru
          _
      $region28: #{tpu_custom_call.1} parent=5 // pred_fallthru
        _
      %p246 = scmp.le.s32.totalorder 2, %s14
      // Predicated region
      $region37: #{tpu_custom_call.1} parent=5 // pred_check
        %p247 = pneg %p246
      $region38: #{tpu_custom_call.1} parent=5 // pred_check_branch
        %249 = sbr.rel (%p247) target = $region40
      $region39: #{tpu_custom_call.1} parent=5 // pred_region
        %s250 = ssub.s32 %s14, 2
        // Predicated region
        $region41: #{tpu_custom_call.1} parent=39 // pred_check
          %p251 = pneg %p111
        $region42: #{tpu_custom_call.1} parent=39 // pred_check_branch
          %253 = sbr.rel (%p251) target = $region44
        $region43: #{tpu_custom_call.1} parent=39 // pred_region
          %s254 = sand.u32 %s96, 1
          %s255 = scalar_lea.sflag [#allocation4], %s254
          %s256 = sand.u32 %s96, 1
          %s257 = smul.addr %s256, 16
          %s258 = scalar_lea.vmem [#allocation5], %s257
          %259 = dma.done %s255, 256
        $region44: #{tpu_custom_call.1} parent=39 // pred_fallthru
          _
      $region40: #{tpu_custom_call.1} parent=5 // pred_fallthru
        _
    $region6: #{tpu_custom_call.1} parent=1 // loop_footer
      %s18 = sadd.s32 1, %s14
    $region7: #{tpu_custom_call.1} parent=1 // loop_footer_branch
      %13 = sbr.rel target = $region3
    $region8: #{tpu_custom_call.1} parent=1 // loop_exit
      _
    %260 = vsyncpa [#allocation3], 1
    %s261 = scalar_lea.sflag [#allocation3], 1
    %262 = vsyncpa %s261, 1
    %263 = vsyncpa [#allocation4], 1
    %s264 = scalar_lea.sflag [#allocation4], 1
    %265 = vsyncpa %s264, 1

</llo_original>
